<compile_context>
chip_gen: v6e
topology: v6e:2x2x1
jax: 0.10.0
libtpu: 0.0.40
codegen_flags: <defaults>
</compile_context>

<pallas_src>
import functools

import jax
import jax.numpy as jnp
from jax import lax
from jax.experimental import pallas as pl
from jax.experimental.pallas import tpu as pltpu

_LANES = 128


def _round_up(x, m):
    return ((x + m - 1) // m) * m


def _sublane_multiple(dtype):
    itemsize = jnp.dtype(dtype).itemsize
    return {4: 8, 2: 16, 1: 32}.get(itemsize, 8)


def _diffusion_sumsq_kernel(real_ref, fake_ref, out_ref, acc_ref, *,
                            k_steps, t_rows, valid_rows):
    """Accumulates sum((fake - real)**2) over the k (reduction) grid axis."""
    p = pl.program_id(0)
    k = pl.program_id(1)

    @pl.when(k == 0)
    def _init():
        acc_ref[...] = jnp.zeros_like(acc_ref)

    d = fake_ref[...].astype(jnp.float32) - real_ref[...].astype(jnp.float32)
    sq = d * d

    # Only the globally-last block can be row-partial; statically skip the mask
    # when the tile divides the valid rows evenly.
    if valid_rows % t_rows != 0:
        blk = p * k_steps + k
        row_ids = blk * t_rows + lax.broadcasted_iota(jnp.int32, sq.shape, 0)
        sq = jnp.where(row_ids < valid_rows, sq, 0.0)

    # Vreg-shaped accumulator: reduce rows with plain VALU adds (hidden under DMA);
    # the expensive cross-lane/sublane reduce happens once, at finalize.
    acc_ref[...] += sq.reshape(t_rows // 8, 8, _LANES).sum(axis=0)

    @pl.when(k == k_steps - 1)
    def _finalize():
        out_ref[...] = jnp.sum(acc_ref[...]).reshape(1, 1)


def diffusion_loss_pallas(real_B, fake_B, *, tile_bytes=4 << 20, num_parallel=1):
    """DiffusionLoss forward: 2 * mean((fake_B - real_B)**2). Returns scalar f32.

    num_parallel=1 for single-TC chips (v5e/v6e); num_parallel=2 on v7x.
    """
    assert real_B.shape == fake_B.shape, (real_B.shape, fake_B.shape)
    assert real_B.dtype == fake_B.dtype, (real_B.dtype, fake_B.dtype)
    total = real_B.size
    itemsize = jnp.dtype(real_B.dtype).itemsize
    sub = _sublane_multiple(real_B.dtype)

    r_flat = real_B.reshape(-1)   # free reshape (contiguous)
    f_flat = fake_B.reshape(-1)

    rows = total // _LANES        # number of full 128-wide rows
    main = rows * _LANES          # elements covered by the Pallas kernel
    kernel_sum = jnp.float32(0.0)

    if rows >= sub:
        # Tile sized in bytes => ~8192 rows for f32, ~16384 for bf16; rounded to the
        # packed-sublane multiple of the dtype.
        target_rows = max(sub, (tile_bytes // (_LANES * itemsize)) // sub * sub)
        t_rows = max(sub, min(target_rows, _round_up(rows, sub)))
        total_blocks = pl.cdiv(rows, t_rows)
        np_ = num_parallel
        if np_ < 1 or total_blocks % np_ != 0:
            np_ = 1  # avoid fully out-of-bounds blocks on uneven parallel splits
        k_steps = total_blocks // np_

        if main == total:
            r2d = r_flat.reshape(rows, _LANES)           # free reshape, no copy
            f2d = f_flat.reshape(rows, _LANES)
        else:
            # Rare misaligned case: prefix slice may materialize one copy of `main`
            # elements per input; the <128-element tail is handled below in XLA.
            r2d = r_flat[:main].reshape(rows, _LANES)
            f2d = f_flat[:main].reshape(rows, _LANES)

        in_map = lambda p, k: (p * k_steps + k, 0)
        kernel = functools.partial(
            _diffusion_sumsq_kernel,
            k_steps=k_steps, t_rows=t_rows, valid_rows=rows)

        # 2 inputs x 2 pipeline buffers; keep well inside v7x's 64 MiB physical VMEM.
        buf_bytes = 2 * 2 * t_rows * _LANES * itemsize
        vmem_limit = int(min(max(buf_bytes + (8 << 20), 32 << 20), 48 << 20))

        cost = pl.CostEstimate(
            flops=3 * main,
            transcendentals=0,
            bytes_accessed=2 * main * itemsize + np_ * 4)

        partials = pl.pallas_call(
            kernel,
            out_shape=jax.ShapeDtypeStruct((np_, 1), jnp.float32),
            grid_spec=pltpu.PrefetchScalarGridSpec(
                num_scalar_prefetch=0,
                grid=(np_, k_steps),
                in_specs=[
                    pl.BlockSpec((t_rows, _LANES), in_map),
                    pl.BlockSpec((t_rows, _LANES), in_map),
                ],
                out_specs=pl.BlockSpec((1, 1), lambda p, k: (p, 0)),
                scratch_shapes=[pltpu.VMEM((8, _LANES), jnp.float32)],
            ),
            compiler_params=pltpu.CompilerParams(
                dimension_semantics=("parallel", "arbitrary"),
                vmem_limit_bytes=vmem_limit,
            ),
            cost_estimate=cost,
        )(r2d, f2d)
        kernel_sum = jnp.sum(partials)
    else:
        main = 0  # tiny input: everything handled by the fused XLA tail below

    if main < total:
        dt = (f_flat[main:].astype(jnp.float32)
              - r_flat[main:].astype(jnp.float32))
        tail_sum = jnp.sum(dt * dt)
    else:
        tail_sum = jnp.float32(0.0)

    # mean over the GLOBAL element count, then x2 (mean + MSELoss over same tensors).
    mse = (kernel_sum + tail_sum) / jnp.float32(total)
    return mse * jnp.float32(2.0)


def diffusion_loss_reference(real_B, fake_B):
    """Pure-JAX reference matching the PyTorch module."""
    r = real_B.astype(jnp.float32)
    f = fake_B.astype(jnp.float32)
    mse = jnp.mean((f - r) ** 2)
    return mse + mse


if __name__ == "__main__":
    key = jax.random.PRNGKey(0)
    k1, k2, k3, k4, k5, k6 = jax.random.split(key, 6)

    # 1) Small NCHW inputs, 128-aligned total -> fully copy-free single-tile path.
    real_B = jax.random.normal(k1, (2, 4, 16, 16), dtype=jnp.float32)
    fake_B = jax.random.normal(k2, (2, 4, 16, 16), dtype=jnp.float32)
    loss = diffusion_loss_pallas(real_B, fake_B)
    jax.block_until_ready(loss)
    ref = diffusion_loss_reference(real_B, fake_B)
    assert jnp.allclose(loss, ref, rtol=1e-5, atol=1e-6), (loss, ref)

    # 2) Misaligned total -> in-kernel partial-block masking + XLA lane tail.
    real2 = jax.random.normal(k3, (2, 3, 15, 17), dtype=jnp.float32)
    fake2 = jax.random.normal(k4, (2, 3, 15, 17), dtype=jnp.float32)
    loss2 = diffusion_loss_pallas(real2, fake2)
    jax.block_until_ready(loss2)
    ref2 = diffusion_loss_reference(real2, fake2)
    assert jnp.allclose(loss2, ref2, rtol=1e-5, atol=1e-6), (loss2, ref2)

    # 3) Multi-step accumulation + 2-way parallel split (forced small tile).
    real3 = jax.random.normal(k5, (2, 8, 32, 128), dtype=jnp.float32)
    fake3 = jax.random.normal(k6, (2, 8, 32, 128), dtype=jnp.float32)
    loss3 = diffusion_loss_pallas(real3, fake3, tile_bytes=64 << 10, num_parallel=2)
    jax.block_until_ready(loss3)
    ref3 = diffusion_loss_reference(real3, fake3)
    assert jnp.allclose(loss3, ref3, rtol=1e-5, atol=1e-6), (loss3, ref3)

    # 4) bf16 inputs: native-dtype DMA, dtype-aware sublane rounding, f32 compute.
    real4 = real_B.astype(jnp.bfloat16)
    fake4 = fake_B.astype(jnp.bfloat16)
    loss4 = diffusion_loss_pallas(real4, fake4)
    jax.block_until_ready(loss4)
    ref4 = diffusion_loss_reference(real4, fake4)
    assert jnp.allclose(loss4, ref4, rtol=1e-4, atol=1e-6), (loss4, ref4)

    print("KERNEL_OK")
</pallas_src>

<mosaic_0001>
module attributes {stable_mosaic.version = 11 : i64} {
  func.func @_diffusion_sumsq_kernel(%arg0: i32, %arg1: i32, %arg2: memref<16x128xf32, #tpu.memory_space<vmem>>, %arg3: memref<16x128xf32, #tpu.memory_space<vmem>>, %arg4: memref<1x1xf32, #tpu.memory_space<vmem>>, %arg5: memref<8x128xf32, #tpu.memory_space<vmem>>) attributes {dimension_semantics = [#tpu.dimension_semantics<parallel>, #tpu.dimension_semantics<arbitrary>], iteration_bounds = array<i64: 1, 1>, scalar_prefetch = 0 : i64, scratch_operands = 1 : i64, tpu.core_type = #tpu.core_type<tc>, window_params = [{transform_indices = @transform_0, window_bounds = array<i64: 16, 128>}, {transform_indices = @transform_1, window_bounds = array<i64: 16, 128>}, {transform_indices = @transform_2, window_bounds = array<i64: 1, 1>}]} {
    %c0_i32 = arith.constant 0 : i32
    %0 = arith.cmpi eq, %arg1, %c0_i32 : i32
    %1 = arith.extui %0 : i1 to i32
    %c0_i32_0 = arith.constant 0 : i32
    %2 = arith.cmpi ne, %1, %c0_i32_0 : i32
    scf.if %2 {
      %cst_10 = arith.constant 0.000000e+00 : f32
      %15 = vector.broadcast %cst_10 : f32 to vector<8x128xf32>
      %c0_11 = arith.constant 0 : index
      %c0_12 = arith.constant 0 : index
      %16 = vector.load %arg5[%c0_11, %c0_12] : memref<8x128xf32, #tpu.memory_space<vmem>>, vector<8x128xf32>
      tpu.vector_store %arg5[%c0_11, %c0_12], %15 {strides = array<i32>} : memref<8x128xf32, #tpu.memory_space<vmem>>, vector<8x128xf32>,
    } else {
    }
    %c0 = arith.constant 0 : index
    %c0_1 = arith.constant 0 : index
    %3 = vector.load %arg3[%c0, %c0_1] : memref<16x128xf32, #tpu.memory_space<vmem>>, vector<16x128xf32>
    %c0_2 = arith.constant 0 : index
    %c0_3 = arith.constant 0 : index
    %4 = vector.load %arg2[%c0_2, %c0_3] : memref<16x128xf32, #tpu.memory_space<vmem>>, vector<16x128xf32>
    %5 = arith.subf %3, %4 : vector<16x128xf32>
    %6 = arith.mulf %5, %5 : vector<16x128xf32>
    %c0_4 = arith.constant 0 : index
    %c0_5 = arith.constant 0 : index
    %7 = vector.load %arg5[%c0_4, %c0_5] : memref<8x128xf32, #tpu.memory_space<vmem>>, vector<8x128xf32>
    %8 = vector.shape_cast %6 : vector<16x128xf32> to vector<2x8x128xf32>
    %cst = arith.constant dense<0.000000e+00> : vector<8x128xf32>
    %9 = vector.multi_reduction <add>, %8, %cst [0] : vector<2x8x128xf32> to vector<8x128xf32>
    %10 = arith.addf %7, %9 : vector<8x128xf32>
    %c0_6 = arith.constant 0 : index
    %c0_7 = arith.constant 0 : index
    %11 = vector.load %arg5[%c0_6, %c0_7] : memref<8x128xf32, #tpu.memory_space<vmem>>, vector<8x128xf32>
    tpu.vector_store %arg5[%c0_6, %c0_7], %10 {strides = array<i32>} : memref<8x128xf32, #tpu.memory_space<vmem>>, vector<8x128xf32>,
    %c0_i32_8 = arith.constant 0 : i32
    %12 = arith.cmpi eq, %arg1, %c0_i32_8 : i32
    %13 = arith.extui %12 : i1 to i32
    %c0_i32_9 = arith.constant 0 : i32
    %14 = arith.cmpi ne, %13, %c0_i32_9 : i32
    scf.if %14 {
      %c0_10 = arith.constant 0 : index
      %c0_11 = arith.constant 0 : index
      %15 = vector.load %arg5[%c0_10, %c0_11] : memref<8x128xf32, #tpu.memory_space<vmem>>, vector<8x128xf32>
      %16 = vector.shape_cast %15 : vector<8x128xf32> to vector<1x8x128xf32>
      %cst_12 = arith.constant dense<0.000000e+00> : vector<1xf32>
      %17 = vector.multi_reduction <add>, %16, %cst_12 [1, 2] : vector<1x8x128xf32> to vector<1xf32>
      %18 = vector.shape_cast %17 : vector<1xf32> to vector<1x1x1xf32>
      %19 = vector.extract %18[0, 0, 0] : f32 from vector<1x1x1xf32>
      %20 = vector.broadcast %19 : f32 to vector<1x1xf32>
      %c0_13 = arith.constant 0 : index
      %c0_14 = arith.constant 0 : index
      %21 = vector.load %arg4[%c0_13, %c0_14] : memref<1x1xf32, #tpu.memory_space<vmem>>, vector<1x1xf32>
      tpu.vector_store %arg4[%c0_13, %c0_14], %20 {strides = array<i32>} : memref<1x1xf32, #tpu.memory_space<vmem>>, vector<1x1xf32>,
    } else {
    }
    return
  }
  func.func @transform_0(%arg0: i32, %arg1: i32) -> (i32, i32) {
    %c1_i32 = arith.constant 1 : i32
    %0 = arith.muli %arg0, %c1_i32 : i32
    %1 = arith.addi %0, %arg1 : i32
    %c0_i32 = arith.constant 0 : i32
    %c0_i32_0 = arith.constant 0 : i32
    return %1, %c0_i32 : i32, i32
  }
  func.func @transform_1(%arg0: i32, %arg1: i32) -> (i32, i32) {
    %c1_i32 = arith.constant 1 : i32
    %0 = arith.muli %arg0, %c1_i32 : i32
    %1 = arith.addi %0, %arg1 : i32
    %c0_i32 = arith.constant 0 : i32
    %c0_i32_0 = arith.constant 0 : i32
    return %1, %c0_i32 : i32, i32
  }
  func.func @transform_2(%arg0: i32, %arg1: i32) -> (i32, i32) {
    %c0_i32 = arith.constant 0 : i32
    %c0_i32_0 = arith.constant 0 : i32
    return %arg0, %c0_i32 : i32, i32
  }
}

</mosaic_0001>

<llo_original>
// kernel: tpu_custom_call.1
$region0: #{tpu_custom_call.1}
  #allocation0 [shape = 'u32[]', space=smem, size = 0x4, offset = 0x4, fixed_abs, tag = 'smem constant byte address 0x4 - core index']
  #allocation1 [shape = 'u32[144,128]{1,0:T(1,128)}', space=vmem, size = 0x12000, scoped, tag = 'internal scratch']
  #allocation2 [shape = 'f32[8,128]{1,0:T(8,128)}', space=vmem, size = 0x1000, scoped, tag = 'scratch operand']
  %s0 = inlined_call_operand.hbm [shape: f32[16,128], index: 0, kind: input, shape index: {}]
  %s1 = inlined_call_operand.hbm [shape: f32[16,128], index: 1, kind: input, shape index: {}]
  %s2 = inlined_call_operand.hbm [shape: f32[1,1], index: 2, kind: output, shape index: {}]
  %s3 = sld [smem:[#allocation0]]
  $region34: #{tpu_custom_call.1} parent=0
    _
  %s5 = ssub.s32 1, %s3
  %s6 = scalar_select 0, %s5, %s3
  $region1: #{tpu_custom_call.1} parent=0
    #allocation3 [shape = 'u8[8192]{0}', space=vmem, size = 0x2000, scoped, tag = 'input window, operand 0, single buffered']
    #allocation4 [shape = 's32[1]{0}', space=sflag, size = 0x4, scoped, tag = 'scoped memory for tpu_custom_call.1']
    #allocation5 [shape = 's32[1]{0}', space=sflag, size = 0x4, scoped, tag = 'scoped memory for tpu_custom_call.1']
    #allocation6 [shape = 'u8[8192]{0}', space=vmem, size = 0x2000, scoped, tag = 'input window, operand 1, single buffered']
    #allocation7 [shape = 's32[1]{0}', space=sflag, size = 0x4, scoped, tag = 'scoped memory for tpu_custom_call.1']
    #allocation8 [shape = 'u8[512]{0}', space=vmem, size = 0x400, scoped, tag = 'output window, operand 0, single buffered']
    %7 = vsyncpa [#allocation4], 0
    %8 = vsyncpa [#allocation7], 0
    %9 = vsyncpa [#allocation5], 0
    // Predicated region
    $region2: #{tpu_custom_call.1} parent=1 // pred_check
      _
    $region3: #{tpu_custom_call.1} parent=1 // pred_check_branch
      %11 = sbr.rel (0) target = $region5
    $region4: #{tpu_custom_call.1} parent=1 // pred_region
      %s12 = sadd.s32 0, 0
      %s13 = smul.u32 2, %s12
      %s15 = ssub.s32 256, 256
      %16 = vsyncadd [#allocation4], %s15
      %s17 = smul.addr %s13, 128
      %s18 = scalar_lea.hbm %s0, %s17
      %s19 = sshll.u32 [#allocation3], 4
      %s20 = int_to_ptr.vmem [resolvable:$true] %s19
      %25 = dma.hbm_to_vmem [thread:$0]  %s18, 256, %s20, [#allocation4], 128, 128, 8
    $region5: #{tpu_custom_call.1} parent=1 // pred_fallthru
      _
    // Predicated region
    $region6: #{tpu_custom_call.1} parent=1 // pred_check
      _
    $region7: #{tpu_custom_call.1} parent=1 // pred_check_branch
      %27 = sbr.rel (0) target = $region9
    $region8: #{tpu_custom_call.1} parent=1 // pred_region
      %s28 = sadd.s32 0, 0
      %s29 = smul.u32 2, %s28
      %s31 = ssub.s32 256, 256
      %32 = vsyncadd [#allocation7], %s31
      %s33 = smul.addr %s29, 128
      %s34 = scalar_lea.hbm %s1, %s33
      %s35 = sshll.u32 [#allocation6], 4
      %s36 = int_to_ptr.vmem [resolvable:$true] %s35
      %41 = dma.hbm_to_vmem [thread:$0]  %s34, 256, %s36, [#allocation7], 128, 128, 8
    $region9: #{tpu_custom_call.1} parent=1 // pred_fallthru
      _
    // Predicated region
    $region10: #{tpu_custom_call.1} parent=1 // pred_check
      _
    $region11: #{tpu_custom_call.1} parent=1 // pred_check_branch
      %43 = sbr.rel (0) target = $region13
    $region12: #{tpu_custom_call.1} parent=1 // pred_region
      %44 = dma.done [#allocation4], 256
    $region13: #{tpu_custom_call.1} parent=1 // pred_fallthru
      _
    // Predicated region
    $region14: #{tpu_custom_call.1} parent=1 // pred_check
      _
    $region15: #{tpu_custom_call.1} parent=1 // pred_check_branch
      %46 = sbr.rel (0) target = $region17
    $region16: #{tpu_custom_call.1} parent=1 // pred_region
      %47 = dma.done [#allocation7], 256
    $region17: #{tpu_custom_call.1} parent=1 // pred_fallthru
      _
    %s48 = sadd.s32 0, 0
    %s49 = smul.u32 2, %s48
    %s50 = sadd.s32 0, 0
    %s51 = smul.u32 2, %s50
    %p52 = scmp.eq.s32.totalorder 0, 0
    // Predicated region
    $region18: #{tpu_custom_call.1} parent=1 // pred_check
      %p53 = pneg %p52
    $region19: #{tpu_custom_call.1} parent=1 // pred_check_branch
      %55 = sbr.rel (%p53) target = $region21
    $region20: #{tpu_custom_call.1} parent=1 // pred_region
      %56 = vst [vmem:[#allocation2] sm:$0xff] 0.0
    $region21: #{tpu_custom_call.1} parent=1 // pred_fallthru
      _
    %v57 = vld [vmem:[#allocation6] sm:$0xff]
    %v58 = vld [vmem:[#allocation6 + $0x8] sm:$0xff]
    %v59 = vld [vmem:[#allocation3] sm:$0xff]
    %v60 = vld [vmem:[#allocation3 + $0x8] sm:$0xff]
    %v61 = vsub.f32 %v57, %v59
    %v62 = vsub.f32 %v58, %v60
    %v63 = vmul.f32 %v61, %v61
    %v64 = vmul.f32 %v62, %v62
    %v65 = vld [vmem:[#allocation2] sm:$0xff]
    %v66 = vadd.f32 %v63, %v64
    %v67 = vadd.f32 %v65, %v66
    %68 = vst [vmem:[#allocation2] sm:$0xff] %v67
    // Predicated region
    $region22: #{tpu_custom_call.1} parent=1 // pred_check
      %p69 = pneg %p52
    $region23: #{tpu_custom_call.1} parent=1 // pred_check_branch
      %71 = sbr.rel (%p69) target = $region25
    $region24: #{tpu_custom_call.1} parent=1 // pred_region
      %v72 = vld [vmem:[#allocation2] sm:$0xff]
      %73 = vadd.xlane.f32.xlu0 %v72
      %v74 = vpop.xlane.xlu0 %73
      %v75 = vrot.slane %v74, 4
      %v76 = vadd.f32 %v74, %v75
      %v77 = vrot.slane %v76, 2
      %v78 = vadd.f32 %v76, %v77
      %v79 = vrot.slane %v78, 1
      %v80 = vadd.f32 %v78, %v79
      %s81 = vtos %v80
      %v82 = vstv %s81
      %vm83 = vcmask 0
      %84 = vst.msk [vmem:[#allocation8] sm:$0x1] %vm83, %v82
    $region25: #{tpu_custom_call.1} parent=1 // pred_fallthru
      _
    // Predicated region
    $region26: #{tpu_custom_call.1} parent=1 // pred_check
      _
    $region27: #{tpu_custom_call.1} parent=1 // pred_check_branch
      %86 = sbr.rel (0) target = $region29
    $region28: #{tpu_custom_call.1} parent=1 // pred_region
      %s88 = ssub.s32 16, 16
      %89 = vsyncadd [#allocation5], %s88
      %s91 = sshll.u32 [#allocation8], 4
      %s92 = int_to_ptr.vmem [resolvable:$true] %s91
      %94 = dma.vmem_to_hbm [thread:$0]  %s92, 16, %s2, [#allocation5]
    $region29: #{tpu_custom_call.1} parent=1 // pred_fallthru
      _
    // Predicated region
    $region30: #{tpu_custom_call.1} parent=1 // pred_check
      _
    $region31: #{tpu_custom_call.1} parent=1 // pred_check_branch
      %96 = sbr.rel (0) target = $region33
    $region32: #{tpu_custom_call.1} parent=1 // pred_region
      %97 = dma.done [#allocation5], 16
    $region33: #{tpu_custom_call.1} parent=1 // pred_fallthru
      _
    %98 = vsyncpa [#allocation4], 1
    %99 = vsyncpa [#allocation7], 1
    %100 = vsyncpa [#allocation5], 1

</llo_original>
